<compile_context>
chip_gen: v7x
topology: tpu7x:2x2x1
jax: 0.10.0
libtpu: 0.0.40
codegen_flags: <defaults>
</compile_context>

<pallas_src>
import jax
import jax.numpy as jnp
from jax.experimental import pallas as pl
from jax.experimental.pallas import tpu as pltpu


# ---------------------------------------------------------------------------
# Kernel: one fused 3-layer MLP producing both Q values as a (TB, 2) block.
# ---------------------------------------------------------------------------
def _critic_kernel(s_ref, a_ref,
                   w1s_ref, w1a_ref, b1_ref,
                   w2_ref, b2_ref,
                   w3_ref, b3_ref,
                   out_ref):
    cdt = w1s_ref.dtype  # compute dtype of the MXU feeds (f32 or bf16)

    # Layer 1: concat-free — split contraction over state / action rows.
    h = (jnp.dot(s_ref[...], w1s_ref[...], preferred_element_type=jnp.float32)
         + jnp.dot(a_ref[...], w1a_ref[...], preferred_element_type=jnp.float32)
         + b1_ref[...])
    h = jnp.maximum(h, 0.0)

    # Layer 2 (block-diagonal: the two nets never mix).
    h = jnp.dot(h.astype(cdt), w2_ref[...],
                preferred_element_type=jnp.float32) + b2_ref[...]
    h = jnp.maximum(h, 0.0)

    # Layer 3 -> (TB, 2): column 0 = q1, column 1 = q2.
    q = jnp.dot(h.astype(cdt), w3_ref[...],
                preferred_element_type=jnp.float32) + b3_ref[...]
    out_ref[...] = q.astype(out_ref.dtype)


# ---------------------------------------------------------------------------
# Wrapper
# ---------------------------------------------------------------------------
def uav_critic_forward(state, action, fused_params, *, block_b=1024):
    """state: (B, S), action: (B, A), fused_params from fuse_params().

    Returns (q1, q2), each (B, 1) float32.
    """
    w1_s, w1_a, b1, w2, b2, w3, b3 = fused_params
    B, S = state.shape
    A = action.shape[1]
    compute_dtype = w1_s.dtype

    # Cast activations at the kernel boundary (halves activation DMA bytes
    # when compute_dtype is bf16).
    state = state.astype(compute_dtype)
    action = action.astype(compute_dtype)

    # Batch tile: whole batch if small, otherwise 1024 rows (multiple of 128,
    # comfortably within v7x's 64 MiB VMEM even with double buffering).
    TB = B if B <= block_b else block_b
    grid = (pl.cdiv(B, TB),)

    def batch_spec(cols):
        return pl.BlockSpec((TB, cols), lambda i: (i, 0))

    def resident_spec(arr):
        return pl.BlockSpec(arr.shape, lambda i: (0, 0))

    out = pl.pallas_call(
        _critic_kernel,
        out_shape=jax.ShapeDtypeStruct((B, 2), jnp.float32),
        grid=grid,
        in_specs=[
            batch_spec(S),            # state
            batch_spec(A),            # action
            resident_spec(w1_s),      # W1 (state rows)
            resident_spec(w1_a),      # W1 (action rows)
            resident_spec(b1),
            resident_spec(w2),
            resident_spec(b2),
            resident_spec(w3),
            resident_spec(b3),
        ],
        out_specs=pl.BlockSpec((TB, 2), lambda i: (i, 0)),
        compiler_params=pltpu.CompilerParams(
            dimension_semantics=("parallel",)),
    )(state, action, w1_s, w1_a, b1, w2, b2, w3, b3)

    return out[:, 0:1], out[:, 1:2]


# ---------------------------------------------------------------------------
# Parameter handling
# ---------------------------------------------------------------------------
def init_params(key, state_dim, action_dim, hid_shape):
    """Deterministic synthetic init matching the PyTorch module layout:
    [state_dim + action_dim] + list(hid_shape) + [1] for two independent nets.
    Weights are stored as (in_features, out_features)."""
    dims = [state_dim + action_dim] + list(hid_shape) + [1]
    params = []
    for _ in range(2):  # two Q networks
        for j in range(len(dims) - 1):
            key, kw, kb = jax.random.split(key, 3)
            fan_in = dims[j]
            bound = 1.0 / jnp.sqrt(fan_in)
            w = jax.random.uniform(kw, (dims[j], dims[j + 1]),
                                   minval=-bound, maxval=bound,
                                   dtype=jnp.float32)
            b = jax.random.uniform(kb, (1, dims[j + 1]),
                                   minval=-bound, maxval=bound,
                                   dtype=jnp.float32)
            params += [w, b]
    return tuple(params)


def fuse_params(params, state_dim, compute_dtype=jnp.float32):
    """Fuse the two independent nets into one block-diagonal net (done once,
    outside the per-step call). Biases stay f32; weights are cast to
    `compute_dtype` (f32 or bf16 MXU feeds)."""
    (w1a, b1a, w2a, b2a, w3a, b3a,
     w1b, b1b, w2b, b2b, w3b, b3b) = params
    h1 = w1a.shape[1]
    h2 = w2a.shape[1]

    w1 = jnp.concatenate([w1a, w1b], axis=1)            # (S+A, 2*H1)
    w1_s = w1[:state_dim].astype(compute_dtype)         # (S,   2*H1)
    w1_a = w1[state_dim:].astype(compute_dtype)         # (A,   2*H1)
    b1 = jnp.concatenate([b1a, b1b], axis=1).astype(jnp.float32)

    z2 = jnp.zeros((h1, h2), jnp.float32)
    w2 = jnp.block([[w2a, z2], [z2, w2b]]).astype(compute_dtype)  # (2H1, 2H2)
    b2 = jnp.concatenate([b2a, b2b], axis=1).astype(jnp.float32)

    z3 = jnp.zeros((h2, 1), jnp.float32)
    w3 = jnp.block([[w3a, z3], [z3, w3b]]).astype(compute_dtype)  # (2H2, 2)
    b3 = jnp.concatenate([b3a, b3b], axis=1).astype(jnp.float32)

    return (w1_s, w1_a, b1, w2, b2, w3, b3)


def reference_forward(state, action, params):
    """Plain-JAX reference (matches the PyTorch forward) for sanity checks."""
    x = jnp.concatenate([state, action], axis=1)
    (w1a, b1a, w2a, b2a, w3a, b3a,
     w1b, b1b, w2b, b2b, w3b, b3b) = params
    h = jnp.maximum(x @ w1a + b1a, 0.0)
    h = jnp.maximum(h @ w2a + b2a, 0.0)
    q1 = h @ w3a + b3a
    g = jnp.maximum(x @ w1b + b1b, 0.0)
    g = jnp.maximum(g @ w2b + b2b, 0.0)
    q2 = g @ w3b + b3b
    return q1, q2


# ---------------------------------------------------------------------------
# Self-test
# ---------------------------------------------------------------------------
if __name__ == "__main__":
    B = 8
    state_dim_UAV = 6
    action_dim_UAV = 3
    hid_shape = (32, 32)

    key = jax.random.PRNGKey(0)
    kp, ks, ka = jax.random.split(key, 3)

    params = init_params(kp, state_dim_UAV, action_dim_UAV, hid_shape)
    state = jax.random.normal(ks, (B, state_dim_UAV), dtype=jnp.float32)
    action = jax.random.normal(ka, (B, action_dim_UAV), dtype=jnp.float32)

    q1_ref, q2_ref = reference_forward(state, action, params)

    # --- f32 path: exact module semantics -------------------------------
    fused_f32 = fuse_params(params, state_dim_UAV, jnp.float32)
    q1, q2 = uav_critic_forward(state, action, fused_f32)
    q1 = jax.block_until_ready(q1)
    q2 = jax.block_until_ready(q2)
    assert q1.shape == (B, 1) and q2.shape == (B, 1)
    assert jnp.allclose(q1, q1_ref, atol=1e-4, rtol=1e-4)
    assert jnp.allclose(q2, q2_ref, atol=1e-4, rtol=1e-4)

    # --- bf16 MXU-feed path (f32 accumulation, f32 outputs) --------------
    fused_bf16 = fuse_params(params, state_dim_UAV, jnp.bfloat16)
    q1b, q2b = uav_critic_forward(state, action, fused_bf16)
    q1b = jax.block_until_ready(q1b)
    q2b = jax.block_until_ready(q2b)
    assert jnp.allclose(q1b, q1_ref, atol=1e-1, rtol=1e-1)
    assert jnp.allclose(q2b, q2_ref, atol=1e-1, rtol=1e-1)

    # --- gridded (multi-tile) batch path --------------------------------
    kb1, kb2 = jax.random.split(jax.random.PRNGKey(1))
    Bg = 2048
    state_g = jax.random.normal(kb1, (Bg, state_dim_UAV), dtype=jnp.float32)
    action_g = jax.random.normal(kb2, (Bg, action_dim_UAV), dtype=jnp.float32)
    q1g, q2g = uav_critic_forward(state_g, action_g, fused_f32)  # grid = (2,)
    q1g = jax.block_until_ready(q1g)
    q2g = jax.block_until_ready(q2g)
    q1g_ref, q2g_ref = reference_forward(state_g, action_g, params)
    assert jnp.allclose(q1g, q1g_ref, atol=1e-4, rtol=1e-4)
    assert jnp.allclose(q2g, q2g_ref, atol=1e-4, rtol=1e-4)

    print("KERNEL_OK")
</pallas_src>

<mosaic_0001>
module attributes {stable_mosaic.version = 11 : i64} {
  func.func @_critic_kernel(%arg0: i32, %arg1: memref<8x6xf32, #tpu.memory_space<vmem>>, %arg2: memref<8x3xf32, #tpu.memory_space<vmem>>, %arg3: memref<6x64xf32, #tpu.memory_space<vmem>>, %arg4: memref<3x64xf32, #tpu.memory_space<vmem>>, %arg5: memref<1x64xf32, #tpu.memory_space<vmem>>, %arg6: memref<64x64xf32, #tpu.memory_space<vmem>>, %arg7: memref<1x64xf32, #tpu.memory_space<vmem>>, %arg8: memref<64x2xf32, #tpu.memory_space<vmem>>, %arg9: memref<1x2xf32, #tpu.memory_space<vmem>>, %arg10: memref<8x2xf32, #tpu.memory_space<vmem>>) attributes {dimension_semantics = [#tpu.dimension_semantics<parallel>], iteration_bounds = array<i64: 1>, scalar_prefetch = 0 : i64, scratch_operands = 0 : i64, tpu.core_type = #tpu.core_type<tc>, window_params = [{transform_indices = @transform_0, window_bounds = array<i64: 8, 6>}, {transform_indices = @transform_1, window_bounds = array<i64: 8, 3>}, {pipeline_mode = #tpu.pipeline_mode<synchronous>, transform_indices = @transform_2, window_bounds = array<i64: 6, 64>}, {pipeline_mode = #tpu.pipeline_mode<synchronous>, transform_indices = @transform_3, window_bounds = array<i64: 3, 64>}, {pipeline_mode = #tpu.pipeline_mode<synchronous>, transform_indices = @transform_4, window_bounds = array<i64: 1, 64>}, {pipeline_mode = #tpu.pipeline_mode<synchronous>, transform_indices = @transform_5, window_bounds = array<i64: 64, 64>}, {pipeline_mode = #tpu.pipeline_mode<synchronous>, transform_indices = @transform_6, window_bounds = array<i64: 1, 64>}, {pipeline_mode = #tpu.pipeline_mode<synchronous>, transform_indices = @transform_7, window_bounds = array<i64: 64, 2>}, {pipeline_mode = #tpu.pipeline_mode<synchronous>, transform_indices = @transform_8, window_bounds = array<i64: 1, 2>}, {transform_indices = @transform_9, window_bounds = array<i64: 8, 2>}]} {
    %c0 = arith.constant 0 : index
    %c0_0 = arith.constant 0 : index
    %0 = vector.load %arg1[%c0, %c0_0] : memref<8x6xf32, #tpu.memory_space<vmem>>, vector<8x6xf32>
    %c0_1 = arith.constant 0 : index
    %c0_2 = arith.constant 0 : index
    %1 = vector.load %arg3[%c0_1, %c0_2] : memref<6x64xf32, #tpu.memory_space<vmem>>, vector<6x64xf32>
    %cst = arith.constant dense<0.000000e+00> : vector<8x64xf32>
    %2 = tpu.matmul %0, %1, %cst {dimension_numbers = #tpu.dot_dimension_numbers<[1], [0], [0], [1], [0, 0, 1, 1], [], []>} : vector<8x6xf32>, vector<6x64xf32>, vector<8x64xf32> -> vector<8x64xf32>
    %c0_3 = arith.constant 0 : index
    %c0_4 = arith.constant 0 : index
    %3 = vector.load %arg2[%c0_3, %c0_4] : memref<8x3xf32, #tpu.memory_space<vmem>>, vector<8x3xf32>
    %c0_5 = arith.constant 0 : index
    %c0_6 = arith.constant 0 : index
    %4 = vector.load %arg4[%c0_5, %c0_6] : memref<3x64xf32, #tpu.memory_space<vmem>>, vector<3x64xf32>
    %cst_7 = arith.constant dense<0.000000e+00> : vector<8x64xf32>
    %5 = tpu.matmul %3, %4, %cst_7 {dimension_numbers = #tpu.dot_dimension_numbers<[1], [0], [0], [1], [0, 0, 1, 1], [], []>} : vector<8x3xf32>, vector<3x64xf32>, vector<8x64xf32> -> vector<8x64xf32>
    %6 = arith.addf %2, %5 : vector<8x64xf32>
    %c0_8 = arith.constant 0 : index
    %c0_9 = arith.constant 0 : index
    %7 = vector.load %arg5[%c0_8, %c0_9] : memref<1x64xf32, #tpu.memory_space<vmem>>, vector<1x64xf32>
    %8 = vector.broadcast %7 : vector<1x64xf32> to vector<8x64xf32>
    %9 = arith.addf %6, %8 : vector<8x64xf32>
    %cst_10 = arith.constant 0.000000e+00 : f32
    %10 = vector.broadcast %cst_10 : f32 to vector<8x64xf32>
    %11 = arith.maximumf %9, %10 : vector<8x64xf32>
    %c0_11 = arith.constant 0 : index
    %c0_12 = arith.constant 0 : index
    %12 = vector.load %arg6[%c0_11, %c0_12] : memref<64x64xf32, #tpu.memory_space<vmem>>, vector<64x64xf32>
    %cst_13 = arith.constant dense<0.000000e+00> : vector<8x64xf32>
    %13 = tpu.matmul %11, %12, %cst_13 {dimension_numbers = #tpu.dot_dimension_numbers<[1], [0], [0], [1], [0, 0, 1, 1], [], []>} : vector<8x64xf32>, vector<64x64xf32>, vector<8x64xf32> -> vector<8x64xf32>
    %c0_14 = arith.constant 0 : index
    %c0_15 = arith.constant 0 : index
    %14 = vector.load %arg7[%c0_14, %c0_15] : memref<1x64xf32, #tpu.memory_space<vmem>>, vector<1x64xf32>
    %15 = vector.broadcast %14 : vector<1x64xf32> to vector<8x64xf32>
    %16 = arith.addf %13, %15 : vector<8x64xf32>
    %cst_16 = arith.constant 0.000000e+00 : f32
    %17 = vector.broadcast %cst_16 : f32 to vector<8x64xf32>
    %18 = arith.maximumf %16, %17 : vector<8x64xf32>
    %c0_17 = arith.constant 0 : index
    %c0_18 = arith.constant 0 : index
    %19 = vector.load %arg8[%c0_17, %c0_18] : memref<64x2xf32, #tpu.memory_space<vmem>>, vector<64x2xf32>
    %cst_19 = arith.constant dense<0.000000e+00> : vector<8x2xf32>
    %20 = tpu.matmul %18, %19, %cst_19 {dimension_numbers = #tpu.dot_dimension_numbers<[1], [0], [0], [1], [0, 0, 1, 1], [], []>} : vector<8x64xf32>, vector<64x2xf32>, vector<8x2xf32> -> vector<8x2xf32>
    %c0_20 = arith.constant 0 : index
    %c0_21 = arith.constant 0 : index
    %21 = vector.load %arg9[%c0_20, %c0_21] : memref<1x2xf32, #tpu.memory_space<vmem>>, vector<1x2xf32>
    %22 = vector.broadcast %21 : vector<1x2xf32> to vector<8x2xf32>
    %23 = arith.addf %20, %22 : vector<8x2xf32>
    %c0_22 = arith.constant 0 : index
    %c0_23 = arith.constant 0 : index
    %24 = vector.load %arg10[%c0_22, %c0_23] : memref<8x2xf32, #tpu.memory_space<vmem>>, vector<8x2xf32>
    tpu.vector_store %arg10[%c0_22, %c0_23], %23 {strides = array<i32>} : memref<8x2xf32, #tpu.memory_space<vmem>>, vector<8x2xf32>,
    return
  }
  func.func @transform_0(%arg0: i32) -> (i32, i32) {
    %c0_i32 = arith.constant 0 : i32
    %c0_i32_0 = arith.constant 0 : i32
    return %arg0, %c0_i32 : i32, i32
  }
  func.func @transform_1(%arg0: i32) -> (i32, i32) {
    %c0_i32 = arith.constant 0 : i32
    %c0_i32_0 = arith.constant 0 : i32
    return %arg0, %c0_i32 : i32, i32
  }
  func.func @transform_2(%arg0: i32) -> (i32, i32) {
    %c0_i32 = arith.constant 0 : i32
    %c0_i32_0 = arith.constant 0 : i32
    %c0_i32_1 = arith.constant 0 : i32
    return %c0_i32, %c0_i32_0 : i32, i32
  }
  func.func @transform_3(%arg0: i32) -> (i32, i32) {
    %c0_i32 = arith.constant 0 : i32
    %c0_i32_0 = arith.constant 0 : i32
    %c0_i32_1 = arith.constant 0 : i32
    return %c0_i32, %c0_i32_0 : i32, i32
  }
  func.func @transform_4(%arg0: i32) -> (i32, i32) {
    %c0_i32 = arith.constant 0 : i32
    %c0_i32_0 = arith.constant 0 : i32
    %c0_i32_1 = arith.constant 0 : i32
    return %c0_i32, %c0_i32_0 : i32, i32
  }
  func.func @transform_5(%arg0: i32) -> (i32, i32) {
    %c0_i32 = arith.constant 0 : i32
    %c0_i32_0 = arith.constant 0 : i32
    %c0_i32_1 = arith.constant 0 : i32
    return %c0_i32, %c0_i32_0 : i32, i32
  }
  func.func @transform_6(%arg0: i32) -> (i32, i32) {
    %c0_i32 = arith.constant 0 : i32
    %c0_i32_0 = arith.constant 0 : i32
    %c0_i32_1 = arith.constant 0 : i32
    return %c0_i32, %c0_i32_0 : i32, i32
  }
  func.func @transform_7(%arg0: i32) -> (i32, i32) {
    %c0_i32 = arith.constant 0 : i32
    %c0_i32_0 = arith.constant 0 : i32
    %c0_i32_1 = arith.constant 0 : i32
    return %c0_i32, %c0_i32_0 : i32, i32
  }
  func.func @transform_8(%arg0: i32) -> (i32, i32) {
    %c0_i32 = arith.constant 0 : i32
    %c0_i32_0 = arith.constant 0 : i32
    %c0_i32_1 = arith.constant 0 : i32
    return %c0_i32, %c0_i32_0 : i32, i32
  }
  func.func @transform_9(%arg0: i32) -> (i32, i32) {
    %c0_i32 = arith.constant 0 : i32
    %c0_i32_0 = arith.constant 0 : i32
    return %arg0, %c0_i32 : i32, i32
  }
}

</mosaic_0001>

<llo_original>
// kernel: tpu_custom_call.1
$region0: #{tpu_custom_call.1}
  #allocation0 [shape = 'u32[]', space=smem, size = 0x4, offset = 0x4, fixed_abs, tag = 'smem constant byte address 0x4 - core index']
  #allocation1 [shape = 'u32[144,128]{1,0:T(1,128)}', space=vmem, size = 0x12000, scoped, tag = 'internal scratch']
  %s0 = inlined_call_operand.vmem [shape: f32[8,6], index: 0, kind: input, shape index: {}]
  %s1 = inlined_call_operand.vmem [shape: f32[8,3], index: 1, kind: input, shape index: {}]
  %s2 = inlined_call_operand.vmem [shape: f32[6,64], index: 2, kind: input, shape index: {}]
  %s3 = inlined_call_operand.vmem [shape: f32[3,64], index: 3, kind: input, shape index: {}]
  %s4 = inlined_call_operand.vmem [shape: f32[1,64], index: 4, kind: input, shape index: {}]
  %s5 = inlined_call_operand.vmem [shape: f32[64,64], index: 5, kind: input, shape index: {}]
  %s6 = inlined_call_operand.vmem [shape: f32[1,64], index: 6, kind: input, shape index: {}]
  %s7 = inlined_call_operand.vmem [shape: f32[64,2], index: 7, kind: input, shape index: {}]
  %s8 = inlined_call_operand.vmem [shape: f32[1,2], index: 8, kind: input, shape index: {}]
  %s9 = inlined_call_operand.vmem [shape: f32[8,2], index: 9, kind: output, shape index: {}]
  %s10 = sld [smem:[#allocation0]]
  $region46: #{tpu_custom_call.1} parent=0
    _
  %s12 = ssub.s32 1, %s10
  %s13 = scalar_select 0, %s12, %s10
  // Predicated region
  $region2: #{tpu_custom_call.1} parent=0 // pred_check
    _
  $region3: #{tpu_custom_call.1} parent=0 // pred_check_branch
    %15 = sbr.rel (0) target = $region5
  $region4: #{tpu_custom_call.1} parent=0 // pred_region
    _
  $region5: #{tpu_custom_call.1} parent=0 // pred_fallthru
    _
  // Predicated region
  $region6: #{tpu_custom_call.1} parent=0 // pred_check
    _
  $region7: #{tpu_custom_call.1} parent=0 // pred_check_branch
    %17 = sbr.rel (0) target = $region9
  $region8: #{tpu_custom_call.1} parent=0 // pred_region
    _
  $region9: #{tpu_custom_call.1} parent=0 // pred_fallthru
    _
  // Predicated region
  $region10: #{tpu_custom_call.1} parent=0 // pred_check
    _
  $region11: #{tpu_custom_call.1} parent=0 // pred_check_branch
    %19 = sbr.rel (0) target = $region13
  $region12: #{tpu_custom_call.1} parent=0 // pred_region
    _
  $region13: #{tpu_custom_call.1} parent=0 // pred_fallthru
    _
  // Predicated region
  $region14: #{tpu_custom_call.1} parent=0 // pred_check
    _
  $region15: #{tpu_custom_call.1} parent=0 // pred_check_branch
    %21 = sbr.rel (0) target = $region17
  $region16: #{tpu_custom_call.1} parent=0 // pred_region
    _
  $region17: #{tpu_custom_call.1} parent=0 // pred_fallthru
    _
  // Predicated region
  $region18: #{tpu_custom_call.1} parent=0 // pred_check
    _
  $region19: #{tpu_custom_call.1} parent=0 // pred_check_branch
    %23 = sbr.rel (0) target = $region21
  $region20: #{tpu_custom_call.1} parent=0 // pred_region
    _
  $region21: #{tpu_custom_call.1} parent=0 // pred_fallthru
    _
  // Predicated region
  $region22: #{tpu_custom_call.1} parent=0 // pred_check
    _
  $region23: #{tpu_custom_call.1} parent=0 // pred_check_branch
    %25 = sbr.rel (0) target = $region25
  $region24: #{tpu_custom_call.1} parent=0 // pred_region
    _
  $region25: #{tpu_custom_call.1} parent=0 // pred_fallthru
    _
  // Predicated region
  $region26: #{tpu_custom_call.1} parent=0 // pred_check
    _
  $region27: #{tpu_custom_call.1} parent=0 // pred_check_branch
    %27 = sbr.rel (0) target = $region29
  $region28: #{tpu_custom_call.1} parent=0 // pred_region
    _
  $region29: #{tpu_custom_call.1} parent=0 // pred_fallthru
    _
  // Predicated region
  $region30: #{tpu_custom_call.1} parent=0 // pred_check
    _
  $region31: #{tpu_custom_call.1} parent=0 // pred_check_branch
    %29 = sbr.rel (0) target = $region33
  $region32: #{tpu_custom_call.1} parent=0 // pred_region
    _
  $region33: #{tpu_custom_call.1} parent=0 // pred_fallthru
    _
  // Predicated region
  $region34: #{tpu_custom_call.1} parent=0 // pred_check
    _
  $region35: #{tpu_custom_call.1} parent=0 // pred_check_branch
    %31 = sbr.rel (0) target = $region37
  $region36: #{tpu_custom_call.1} parent=0 // pred_region
    _
  $region37: #{tpu_custom_call.1} parent=0 // pred_fallthru
    _
  %v32 = vld [vmem:[%s0] sm:$0xff]
  %v33 = vld [vmem:[%s2] sm:$0x3f]
  %v34 = vld [vmem:[%s1] sm:$0xff]
  %v35 = vld [vmem:[%s3] sm:$0x7]
  %vm36 = vcmask 23552
  %v38 = vsel %vm36, %v34, 0
  %vm40 = vcmask 1042432
  %v42 = vsel %vm40, %v35, 0
  %44 = vmatprep.subr.mxu0 0.0
  %45 = vmatpush1.msra.mxu0 %v42
  %46 = vmatprep.subr.mxu0 0.0
  %47 = vmatpush1.msra.mxu0 0.0
  %48 = vmatprep.subr.mxu0 0.0
  %49 = vmatpush1.msra.mxu0 0.0
  %50 = vmatprep.subr.mxu0 0.0
  %51 = vmatpush1.msra.mxu0 0.0
  %52 = vmatprep.subr.mxu0 0.0
  %53 = vmatpush1.msra.mxu0 0.0
  %54 = vmatprep.subr.mxu0 0.0
  %55 = vmatpush1.msra.mxu0 0.0
  %56 = vmatprep.subr.mxu0 0.0
  %57 = vmatpush1.msra.mxu0 0.0
  %58 = vmatprep.subr.mxu0 0.0
  %59 = vmatpush1.msra.mxu0 0.0
  %60 = vmatprep.subr.mxu0 0.0
  %61 = vmatpush1.msra.mxu0 0.0
  %62 = vmatprep.subr.mxu0 0.0
  %63 = vmatpush1.msra.mxu0 0.0
  %64 = vmatprep.subr.mxu0 0.0
  %65 = vmatpush1.msra.mxu0 0.0
  %66 = vmatprep.subr.mxu0 0.0
  %67 = vmatpush1.msra.mxu0 0.0
  %68 = vmatprep.subr.mxu0 0.0
  %69 = vmatpush1.msra.mxu0 0.0
  %70 = vmatprep.subr.mxu0 0.0
  %71 = vmatpush1.msra.mxu0 0.0
  %72 = vmatprep.subr.mxu0 0.0
  %73 = vmatpush1.msra.mxu0 0.0
  %74 = vmatprep.subr.mxu0 0.0
  %75 = vmatpush1.msra.mxu0 0.0
  %76 = vmatprep.subr.mxu0 0.0
  %77 = vmatpush1.msra.mxu0 0.0
  %78 = vmatprep.subr.mxu0 0.0
  %79 = vmatpush1.msra.mxu0 0.0
  %80 = vmatprep.subr.mxu0 0.0
  %81 = vmatpush1.msra.mxu0 0.0
  %82 = vmatprep.subr.mxu0 0.0
  %83 = vmatpush1.msra.mxu0 0.0
  %84 = vmatprep.subr.mxu0 0.0
  %85 = vmatpush1.msra.mxu0 0.0
  %86 = vmatprep.subr.mxu0 0.0
  %87 = vmatpush1.msra.mxu0 0.0
  %88 = vmatprep.subr.mxu0 0.0
  %89 = vmatpush1.msra.mxu0 0.0
  %90 = vmatprep.subr.mxu0 0.0
  %91 = vmatpush1.msra.mxu0 0.0
  %92 = vmatprep.subr.mxu0 0.0
  %93 = vmatpush1.msra.mxu0 0.0
  %94 = vmatprep.subr.mxu0 0.0
  %95 = vmatpush1.msra.mxu0 0.0
  %96 = vmatprep.subr.mxu0 0.0
  %97 = vmatpush1.msra.mxu0 0.0
  %98 = vmatprep.subr.mxu0 0.0
  %99 = vmatpush1.msra.mxu0 0.0
  %100 = vmatprep.subr.mxu0 0.0
  %101 = vmatpush1.msra.mxu0 0.0
  %102 = vmatprep.subr.mxu0 0.0
  %103 = vmatpush1.msra.mxu0 0.0
  %104 = vmatprep.subr.mxu0 0.0
  %105 = vmatpush1.msra.mxu0 0.0
  %106 = vmatprep.subr.mxu0 0.0
  %107 = vmatpush1.msra.mxu0 0.0
  %108 = vmatprep.mubr.f32.mxu0 0.0
  %109 = vmatmul.mubr.f32.gmra.mrb[0].mxu0 %v38
  %v110 = vpop.f32.mrb[0].mxu0
  %v111 = vadd.f32 0.0, %v110
  %v112 = vpop.f32.mrb[0].mxu0
  %113 = vdwg.mxu0
  %vm114 = vcmask 48128
  %v116 = vsel %vm114, %v32, 0
  %vm118 = vcmask 1045504
  %v120 = vsel %vm118, %v33, 0
  %122 = vmatprep.subr.mxu0 0.0
  %123 = vmatpush1.msra.mxu0 %v120
  %124 = vmatprep.subr.mxu0 0.0
  %125 = vmatpush1.msra.mxu0 0.0
  %126 = vmatprep.subr.mxu0 0.0
  %127 = vmatpush1.msra.mxu0 0.0
  %128 = vmatprep.subr.mxu0 0.0
  %129 = vmatpush1.msra.mxu0 0.0
  %130 = vmatprep.subr.mxu0 0.0
  %131 = vmatpush1.msra.mxu0 0.0
  %132 = vmatprep.subr.mxu0 0.0
  %133 = vmatpush1.msra.mxu0 0.0
  %134 = vmatprep.subr.mxu0 0.0
  %135 = vmatpush1.msra.mxu0 0.0
  %136 = vmatprep.subr.mxu0 0.0
  %137 = vmatpush1.msra.mxu0 0.0
  %138 = vmatprep.subr.mxu0 0.0
  %139 = vmatpush1.msra.mxu0 0.0
  %140 = vmatprep.subr.mxu0 0.0
  %141 = vmatpush1.msra.mxu0 0.0
  %142 = vmatprep.subr.mxu0 0.0
  %143 = vmatpush1.msra.mxu0 0.0
  %144 = vmatprep.subr.mxu0 0.0
  %145 = vmatpush1.msra.mxu0 0.0
  %146 = vmatprep.subr.mxu0 0.0
  %147 = vmatpush1.msra.mxu0 0.0
  %148 = vmatprep.subr.mxu0 0.0
  %149 = vmatpush1.msra.mxu0 0.0
  %150 = vmatprep.subr.mxu0 0.0
  %151 = vmatpush1.msra.mxu0 0.0
  %152 = vmatprep.subr.mxu0 0.0
  %153 = vmatpush1.msra.mxu0 0.0
  %154 = vmatprep.subr.mxu0 0.0
  %155 = vmatpush1.msra.mxu0 0.0
  %156 = vmatprep.subr.mxu0 0.0
  %157 = vmatpush1.msra.mxu0 0.0
  %158 = vmatprep.subr.mxu0 0.0
  %159 = vmatpush1.msra.mxu0 0.0
  %160 = vmatprep.subr.mxu0 0.0
  %161 = vmatpush1.msra.mxu0 0.0
  %162 = vmatprep.subr.mxu0 0.0
  %163 = vmatpush1.msra.mxu0 0.0
  %164 = vmatprep.subr.mxu0 0.0
  %165 = vmatpush1.msra.mxu0 0.0
  %166 = vmatprep.subr.mxu0 0.0
  %167 = vmatpush1.msra.mxu0 0.0
  %168 = vmatprep.subr.mxu0 0.0
  %169 = vmatpush1.msra.mxu0 0.0
  %170 = vmatprep.subr.mxu0 0.0
  %171 = vmatpush1.msra.mxu0 0.0
  %172 = vmatprep.subr.mxu0 0.0
  %173 = vmatpush1.msra.mxu0 0.0
  %174 = vmatprep.subr.mxu0 0.0
  %175 = vmatpush1.msra.mxu0 0.0
  %176 = vmatprep.subr.mxu0 0.0
  %177 = vmatpush1.msra.mxu0 0.0
  %178 = vmatprep.subr.mxu0 0.0
  %179 = vmatpush1.msra.mxu0 0.0
  %180 = vmatprep.subr.mxu0 0.0
  %181 = vmatpush1.msra.mxu0 0.0
  %182 = vmatprep.subr.mxu0 0.0
  %183 = vmatpush1.msra.mxu0 0.0
  %184 = vmatprep.subr.mxu0 0.0
  %185 = vmatpush1.msra.mxu0 0.0
  %186 = vmatprep.mubr.f32.mxu0 0.0
  %187 = vmatmul.mubr.f32.gmra.mrb[0].mxu0 %v116
  %v188 = vpop.f32.mrb[0].mxu0
  %v189 = vadd.f32 %v111, %v188
  %v190 = vpop.f32.mrb[0].mxu0
  %191 = vdwg.mxu0
  %v192 = vld [vmem:[%s4] sm:$0x1]
  %v194 = vlaneseq
  %v195 = vshrl.u32 %v194, 7
  %v196 = vsub.s32 0, %v195
  %v197 = vrot.slane %v192, %v196
  %v199 = vadd.f32 %v189, %v197
  %v200 = vmax.f32 %v199, 0.0
  %v201 = vld [vmem:[%s5] sm:$0xff]
  %v202 = vld [vmem:[%s5 + $0x8] sm:$0xff]
  %v203 = vld [vmem:[%s5 + $0x10] sm:$0xff]
  %v204 = vld [vmem:[%s5 + $0x18] sm:$0xff]
  %v205 = vld [vmem:[%s5 + $0x20] sm:$0xff]
  %v206 = vld [vmem:[%s5 + $0x28] sm:$0xff]
  %v207 = vld [vmem:[%s5 + $0x30] sm:$0xff]
  %v208 = vld [vmem:[%s5 + $0x38] sm:$0xff]
  %v209 = vld [vmem:[%s6] sm:$0x1]
  %v211 = vlaneseq
  %v212 = vshrl.u32 %v211, 7
  %v213 = vsub.s32 0, %v212
  %v214 = vrot.slane %v209, %v213
  %vm216 = vcmask 523264
  %v218 = vsel %vm216, %v200, 0
  %220 = vmatprep.subr.mxu0 0.0
  %221 = vmatpush1.msra.mxu0 %v201
  %222 = vmatprep.subr.mxu0 0.0
  %223 = vmatpush1.msra.mxu0 %v202
  %224 = vmatprep.subr.mxu0 0.0
  %225 = vmatpush1.msra.mxu0 %v203
  %226 = vmatprep.subr.mxu0 0.0
  %227 = vmatpush1.msra.mxu0 %v204
  %228 = vmatprep.subr.mxu0 0.0
  %229 = vmatpush1.msra.mxu0 %v205
  %230 = vmatprep.subr.mxu0 0.0
  %231 = vmatpush1.msra.mxu0 %v206
  %232 = vmatprep.subr.mxu0 0.0
  %233 = vmatpush1.msra.mxu0 %v207
  %234 = vmatprep.subr.mxu0 0.0
  %235 = vmatpush1.msra.mxu0 %v208
  %236 = vmatprep.subr.mxu0 0.0
  %237 = vmatpush1.msra.mxu0 0.0
  %238 = vmatprep.subr.mxu0 0.0
  %239 = vmatpush1.msra.mxu0 0.0
  %240 = vmatprep.subr.mxu0 0.0
  %241 = vmatpush1.msra.mxu0 0.0
  %242 = vmatprep.subr.mxu0 0.0
  %243 = vmatpush1.msra.mxu0 0.0
  %244 = vmatprep.subr.mxu0 0.0
  %245 = vmatpush1.msra.mxu0 0.0
  %246 = vmatprep.subr.mxu0 0.0
  %247 = vmatpush1.msra.mxu0 0.0
  %248 = vmatprep.subr.mxu0 0.0
  %249 = vmatpush1.msra.mxu0 0.0
  %250 = vmatprep.subr.mxu0 0.0
  %251 = vmatpush1.msra.mxu0 0.0
  %252 = vmatprep.subr.mxu0 0.0
  %253 = vmatpush1.msra.mxu0 0.0
  %254 = vmatprep.subr.mxu0 0.0
  %255 = vmatpush1.msra.mxu0 0.0
  %256 = vmatprep.subr.mxu0 0.0
  %257 = vmatpush1.msra.mxu0 0.0
  %258 = vmatprep.subr.mxu0 0.0
  %259 = vmatpush1.msra.mxu0 0.0
  %260 = vmatprep.subr.mxu0 0.0
  %261 = vmatpush1.msra.mxu0 0.0
  %262 = vmatprep.subr.mxu0 0.0
  %263 = vmatpush1.msra.mxu0 0.0
  %264 = vmatprep.subr.mxu0 0.0
  %265 = vmatpush1.msra.mxu0 0.0
  %266 = vmatprep.subr.mxu0 0.0
  %267 = vmatpush1.msra.mxu0 0.0
  %268 = vmatprep.subr.mxu0 0.0
  %269 = vmatpush1.msra.mxu0 0.0
  %270 = vmatprep.subr.mxu0 0.0
  %271 = vmatpush1.msra.mxu0 0.0
  %272 = vmatprep.subr.mxu0 0.0
  %273 = vmatpush1.msra.mxu0 0.0
  %274 = vmatprep.subr.mxu0 0.0
  %275 = vmatpush1.msra.mxu0 0.0
  %276 = vmatprep.subr.mxu0 0.0
  %277 = vmatpush1.msra.mxu0 0.0
  %278 = vmatprep.subr.mxu0 0.0
  %279 = vmatpush1.msra.mxu0 0.0
  %280 = vmatprep.subr.mxu0 0.0
  %281 = vmatpush1.msra.mxu0 0.0
  %282 = vmatprep.subr.mxu0 0.0
  %283 = vmatpush1.msra.mxu0 0.0
  %284 = vmatprep.mubr.f32.mxu0 0.0
  %285 = vmatmul.mubr.f32.gmra.mrb[0].mxu0 %v218
  %v286 = vpop.f32.mrb[0].mxu0
  %v287 = vadd.f32 %v214, %v286
  %v288 = vpop.f32.mrb[0].mxu0
  %289 = vdwg.mxu0
  %v290 = vmax.f32 %v287, 0.0
  %v291 = vld [vmem:[%s7] sm:$0xff]
  %v292 = vld [vmem:[%s7 + $0x8] sm:$0xff]
  %v293 = vld [vmem:[%s7 + $0x10] sm:$0xff]
  %v294 = vld [vmem:[%s7 + $0x18] sm:$0xff]
  %v295 = vld [vmem:[%s7 + $0x20] sm:$0xff]
  %v296 = vld [vmem:[%s7 + $0x28] sm:$0xff]
  %v297 = vld [vmem:[%s7 + $0x30] sm:$0xff]
  %v298 = vld [vmem:[%s7 + $0x38] sm:$0xff]
  %v299 = vld [vmem:[%s8] sm:$0x1]
  %v301 = vlaneseq
  %v302 = vshrl.u32 %v301, 7
  %v303 = vsub.s32 0, %v302
  %v304 = vrot.slane %v299, %v303
  %v307 = vsel %vm216, %v290, 0
  %309 = vmatprep.subr.mxu0 0.0
  %310 = vmatpush1.msra.mxu0 %v291
  %311 = vmatprep.subr.mxu0 0.0
  %312 = vmatpush1.msra.mxu0 %v292
  %313 = vmatprep.subr.mxu0 0.0
  %314 = vmatpush1.msra.mxu0 %v293
  %315 = vmatprep.subr.mxu0 0.0
  %316 = vmatpush1.msra.mxu0 %v294
  %317 = vmatprep.subr.mxu0 0.0
  %318 = vmatpush1.msra.mxu0 %v295
  %319 = vmatprep.subr.mxu0 0.0
  %320 = vmatpush1.msra.mxu0 %v296
  %321 = vmatprep.subr.mxu0 0.0
  %322 = vmatpush1.msra.mxu0 %v297
  %323 = vmatprep.subr.mxu0 0.0
  %324 = vmatpush1.msra.mxu0 %v298
  %325 = vmatprep.subr.mxu0 0.0
  %326 = vmatpush1.msra.mxu0 0.0
  %327 = vmatprep.subr.mxu0 0.0
  %328 = vmatpush1.msra.mxu0 0.0
  %329 = vmatprep.subr.mxu0 0.0
  %330 = vmatpush1.msra.mxu0 0.0
  %331 = vmatprep.subr.mxu0 0.0
  %332 = vmatpush1.msra.mxu0 0.0
  %333 = vmatprep.subr.mxu0 0.0
  %334 = vmatpush1.msra.mxu0 0.0
  %335 = vmatprep.subr.mxu0 0.0
  %336 = vmatpush1.msra.mxu0 0.0
  %337 = vmatprep.subr.mxu0 0.0
  %338 = vmatpush1.msra.mxu0 0.0
  %339 = vmatprep.subr.mxu0 0.0
  %340 = vmatpush1.msra.mxu0 0.0
  %341 = vmatprep.subr.mxu0 0.0
  %342 = vmatpush1.msra.mxu0 0.0
  %343 = vmatprep.subr.mxu0 0.0
  %344 = vmatpush1.msra.mxu0 0.0
  %345 = vmatprep.subr.mxu0 0.0
  %346 = vmatpush1.msra.mxu0 0.0
  %347 = vmatprep.subr.mxu0 0.0
  %348 = vmatpush1.msra.mxu0 0.0
  %349 = vmatprep.subr.mxu0 0.0
  %350 = vmatpush1.msra.mxu0 0.0
  %351 = vmatprep.subr.mxu0 0.0
  %352 = vmatpush1.msra.mxu0 0.0
  %353 = vmatprep.subr.mxu0 0.0
  %354 = vmatpush1.msra.mxu0 0.0
  %355 = vmatprep.subr.mxu0 0.0
  %356 = vmatpush1.msra.mxu0 0.0
  %357 = vmatprep.subr.mxu0 0.0
  %358 = vmatpush1.msra.mxu0 0.0
  %359 = vmatprep.subr.mxu0 0.0
  %360 = vmatpush1.msra.mxu0 0.0
  %361 = vmatprep.subr.mxu0 0.0
  %362 = vmatpush1.msra.mxu0 0.0
  %363 = vmatprep.subr.mxu0 0.0
  %364 = vmatpush1.msra.mxu0 0.0
  %365 = vmatprep.subr.mxu0 0.0
  %366 = vmatpush1.msra.mxu0 0.0
  %367 = vmatprep.subr.mxu0 0.0
  %368 = vmatpush1.msra.mxu0 0.0
  %369 = vmatprep.subr.mxu0 0.0
  %370 = vmatpush1.msra.mxu0 0.0
  %371 = vmatprep.subr.mxu0 0.0
  %372 = vmatpush1.msra.mxu0 0.0
  %373 = vmatprep.mubr.f32.mxu0 0.0
  %374 = vmatmul.mubr.f32.gmra.mrb[0].mxu0 %v307
  %v375 = vpop.f32.mrb[0].mxu0
  %v376 = vadd.f32 %v304, %v375
  %v377 = vpop.f32.mrb[0].mxu0
  %378 = vdwg.mxu0
  %vm379 = vcmask 15360
  %380 = vst.msk [vmem:[%s9] sm:$0xff] %vm379, %v376
  // Predicated region
  $region38: #{tpu_custom_call.1} parent=0 // pred_check
    _
  $region39: #{tpu_custom_call.1} parent=0 // pred_check_branch
    %382 = sbr.rel (0) target = $region41
  $region40: #{tpu_custom_call.1} parent=0 // pred_region
    _
  $region41: #{tpu_custom_call.1} parent=0 // pred_fallthru
    _
  // Predicated region
  $region42: #{tpu_custom_call.1} parent=0 // pred_check
    _
  $region43: #{tpu_custom_call.1} parent=0 // pred_check_branch
    %384 = sbr.rel (0) target = $region45
  $region44: #{tpu_custom_call.1} parent=0 // pred_region
    _
  $region45: #{tpu_custom_call.1} parent=0 // pred_fallthru
    _

</llo_original>
